<compile_context>
chip_gen: v5e
topology: v5e:2x2
jax: 0.10.0
libtpu: 0.0.40
codegen_flags: <defaults>
</compile_context>

<pallas_src>
import functools

import jax
import jax.numpy as jnp
from jax import lax
from jax.experimental import pallas as pl
from jax.experimental.pallas import tpu as pltpu


def _round_up(x, m):
    return ((x + m - 1) // m) * m


def _lm_head_kernel(x_ref, w1_ref, b1_ref, w2_ref, b2_ref, out_ref, h_ref, *, eps):
    # x_ref:   (tm, H)   row tile of flattened hidden states
    # w1_ref:  (H, H)    dense weight (already [in, out]), resident across the grid
    # b1_ref:  (1, H)    dense bias
    # w2_ref:  (H, tv)   decoder weight tile (gamma folded in), streamed over vocab
    # b2_ref:  (1, tv)   decoder bias tile (beta @ W2 folded in)
    # out_ref: (tm, tv)  logits tile
    # h_ref:   (tm, H)   VMEM scratch holding the normalized transform output

    # Transform (dense -> exact GELU -> LayerNorm) once per row tile; vocab axis
    # is the inner "arbitrary" grid dimension so the scratch stays valid.
    @pl.when(pl.program_id(1) == 0)
    def _():
        h = jnp.dot(x_ref[...], w1_ref[...], preferred_element_type=jnp.float32)
        h = h + b1_ref[...].astype(jnp.float32)
        # exact GELU: 0.5 * x * (1 + erf(x / sqrt(2)))
        h = 0.5 * h * (1.0 + lax.erf(h * 0.7071067811865476))
        # LayerNorm over last dim (biased variance, PyTorch semantics).
        # gamma/beta are pre-folded into w2/b2 in the wrapper.
        mean = jnp.mean(h, axis=-1, keepdims=True)
        centered = h - mean
        var = jnp.mean(centered * centered, axis=-1, keepdims=True)
        h_ref[...] = (centered * lax.rsqrt(var + eps)).astype(h_ref.dtype)

    # Decoder H -> tv for this vocab tile.
    logits = jnp.dot(h_ref[...], w2_ref[...], preferred_element_type=jnp.float32)
    logits = logits + b2_ref[...].astype(jnp.float32)
    out_ref[...] = logits.astype(out_ref.dtype)


def dft_lm_prediction_head(hidden_states, params, *, eps=1e-12, tm=256, tv=2048,
                           out_dtype=None):
    """hidden_states: [B, S, H]  ->  logits: [B, S, V]"""
    B, S, H = hidden_states.shape
    N = B * S

    w1 = params["dense_w"]                 # [H, H]  (in, out)
    b1 = params["dense_b"].reshape(1, H)   # [1, H]
    gamma = params["ln_w"].reshape(H, 1)   # [H, 1]  (column scale of w2's input axis)
    beta = params["ln_b"].reshape(1, H)    # [1, H]
    w2 = params["dec_w"]                   # [H, V]  (in, out)
    V = w2.shape[1]
    b2 = params["dec_b"].reshape(1, V)     # [1, V]

    compute_dtype = w1.dtype               # feed the MXU in the weights' native dtype
    if out_dtype is None:
        out_dtype = hidden_states.dtype

    # Fold LayerNorm affine into the decoder (mathematically identical):
    #   (hn*gamma + beta) @ W2 + b2 == hn @ (gamma[:,None]*W2) + (beta @ W2 + b2)
    w2_eff = (gamma.astype(jnp.float32) * w2.astype(jnp.float32)).astype(compute_dtype)
    b2_eff = (beta.astype(jnp.float32) @ w2.astype(jnp.float32)
              + b2.astype(jnp.float32)).astype(jnp.float32)

    # Tile sizes clamped for small problems; pad so the grid divides evenly.
    assert tm % 8 == 0 and tv % 128 == 0
    tm_eff = min(tm, _round_up(N, 8))
    tv_eff = min(tv, _round_up(V, 128))
    n_pad = _round_up(N, tm_eff)
    v_pad = _round_up(V, tv_eff)

    x = hidden_states.reshape(N, H).astype(compute_dtype)
    if n_pad != N:
        x = jnp.pad(x, ((0, n_pad - N), (0, 0)))
    if v_pad != V:
        w2_eff = jnp.pad(w2_eff, ((0, 0), (0, v_pad - V)))
        b2_eff = jnp.pad(b2_eff, ((0, 0), (0, v_pad - V)))

    grid = (n_pad // tm_eff, v_pad // tv_eff)

    itemsize = jnp.dtype(compute_dtype).itemsize
    cost = pl.CostEstimate(
        flops=2 * N * H * (H + V),
        transcendentals=N * H,
        bytes_accessed=(N * H + H * H + H * V + 2 * H + V) * itemsize
        + N * V * jnp.dtype(out_dtype).itemsize,
    )

    kernel = functools.partial(_lm_head_kernel, eps=eps)
    out = pl.pallas_call(
        kernel,
        out_shape=jax.ShapeDtypeStruct((n_pad, v_pad), out_dtype),
        grid_spec=pltpu.PrefetchScalarGridSpec(
            num_scalar_prefetch=0,
            grid=grid,
            in_specs=[
                pl.BlockSpec((tm_eff, H), lambda i, j: (i, 0)),    # x row tile
                pl.BlockSpec((H, H), lambda i, j: (0, 0)),         # dense weight (resident)
                pl.BlockSpec((1, H), lambda i, j: (0, 0)),         # dense bias
                pl.BlockSpec((H, tv_eff), lambda i, j: (0, j)),    # decoder weight tile
                pl.BlockSpec((1, tv_eff), lambda i, j: (0, j)),    # decoder bias tile
            ],
            out_specs=pl.BlockSpec((tm_eff, tv_eff), lambda i, j: (i, j)),
            scratch_shapes=[pltpu.VMEM((tm_eff, H), compute_dtype)],
        ),
        compiler_params=pltpu.CompilerParams(
            dimension_semantics=("parallel", "arbitrary"),
            vmem_limit_bytes=64 * 1024 * 1024,
        ),
        cost_estimate=cost,
    )(x, w1.astype(compute_dtype), b1, w2_eff, b2_eff)

    if n_pad != N or v_pad != V:
        out = out[:N, :V]
    return out.reshape(B, S, V)


def init_params(key, hidden_size, vocab_size):
    """Deterministic synthetic init mirroring the module's __init__ shapes.
    trunc_normal_(std=0.02) for Linear weights, zeros for biases,
    ones/zeros for LayerNorm."""
    k1, k2 = jax.random.split(key)
    std = 0.02
    dense_w = std * jax.random.truncated_normal(
        k1, -2.0, 2.0, (hidden_size, hidden_size), jnp.float32)
    dec_w = std * jax.random.truncated_normal(
        k2, -2.0, 2.0, (hidden_size, vocab_size), jnp.float32)
    return {
        "dense_w": dense_w,                                     # [H, H] (in, out)
        "dense_b": jnp.zeros((1, hidden_size), jnp.float32),
        "ln_w": jnp.ones((1, hidden_size), jnp.float32),
        "ln_b": jnp.zeros((1, hidden_size), jnp.float32),
        "dec_w": dec_w,                                         # [H, V] (in, out)
        "dec_b": jnp.zeros((1, vocab_size), jnp.float32),       # decoder.bias (zeros)
    }


def _reference(hidden_states, params, eps=1e-12):
    """Pure-JAX reference for correctness checking (unfolded params)."""
    x = hidden_states.astype(jnp.float32)
    h = x @ params["dense_w"] + params["dense_b"]
    h = 0.5 * h * (1.0 + lax.erf(h / jnp.sqrt(2.0)))
    mean = jnp.mean(h, axis=-1, keepdims=True)
    var = jnp.mean((h - mean) ** 2, axis=-1, keepdims=True)
    h = (h - mean) / jnp.sqrt(var + eps)
    h = h * params["ln_w"] + params["ln_b"]
    return h @ params["dec_w"] + params["dec_b"]


if __name__ == "__main__":
    # Small shapes consistent with the module: batch=2, seq=8, hidden=32, vocab=64
    B, S, H, V = 2, 8, 32, 64
    key = jax.random.PRNGKey(0)
    k_x, k_p = jax.random.split(key)

    hidden_states = jax.random.normal(k_x, (B, S, H), jnp.float32)
    params = init_params(k_p, H, V)

    logits = dft_lm_prediction_head(hidden_states, params)
    logits = jax.block_until_ready(logits)

    ref = _reference(hidden_states, params)
    assert logits.shape == (B, S, V)
    assert jnp.allclose(logits, ref, atol=1e-4, rtol=1e-4)

    print("KERNEL_OK")
</pallas_src>

<mosaic_0001>
module attributes {stable_mosaic.version = 11 : i64} {
  func.func @_lm_head_kernel(%arg0: i32, %arg1: i32, %arg2: memref<16x32xf32, #tpu.memory_space<vmem>>, %arg3: memref<32x32xf32, #tpu.memory_space<vmem>>, %arg4: memref<1x32xf32, #tpu.memory_space<vmem>>, %arg5: memref<32x128xf32, #tpu.memory_space<vmem>>, %arg6: memref<1x128xf32, #tpu.memory_space<vmem>>, %arg7: memref<16x128xf32, #tpu.memory_space<vmem>>, %arg8: memref<16x32xf32, #tpu.memory_space<vmem>>) attributes {dimension_semantics = [#tpu.dimension_semantics<parallel>, #tpu.dimension_semantics<arbitrary>], iteration_bounds = array<i64: 1, 1>, scalar_prefetch = 0 : i64, scratch_operands = 1 : i64, tpu.core_type = #tpu.core_type<tc>, window_params = [{transform_indices = @transform_0, window_bounds = array<i64: 16, 32>}, {pipeline_mode = #tpu.pipeline_mode<synchronous>, transform_indices = @transform_1, window_bounds = array<i64: 32, 32>}, {pipeline_mode = #tpu.pipeline_mode<synchronous>, transform_indices = @transform_2, window_bounds = array<i64: 1, 32>}, {transform_indices = @transform_3, window_bounds = array<i64: 32, 128>}, {transform_indices = @transform_4, window_bounds = array<i64: 1, 128>}, {transform_indices = @transform_5, window_bounds = array<i64: 16, 128>}]} {
    %c0_i32 = arith.constant 0 : i32
    %0 = arith.cmpi eq, %arg1, %c0_i32 : i32
    %1 = arith.extui %0 : i1 to i32
    %c0_i32_0 = arith.constant 0 : i32
    %2 = arith.cmpi ne, %1, %c0_i32_0 : i32
    scf.if %2 {
      %c0_8 = arith.constant 0 : index
      %c0_9 = arith.constant 0 : index
      %10 = vector.load %arg2[%c0_8, %c0_9] : memref<16x32xf32, #tpu.memory_space<vmem>>, vector<16x32xf32>
      %c0_10 = arith.constant 0 : index
      %c0_11 = arith.constant 0 : index
      %11 = vector.load %arg3[%c0_10, %c0_11] : memref<32x32xf32, #tpu.memory_space<vmem>>, vector<32x32xf32>
      %cst_12 = arith.constant dense<0.000000e+00> : vector<16x32xf32>
      %12 = tpu.matmul %10, %11, %cst_12 {dimension_numbers = #tpu.dot_dimension_numbers<[1], [0], [0], [1], [0, 0, 1, 1], [], []>} : vector<16x32xf32>, vector<32x32xf32>, vector<16x32xf32> -> vector<16x32xf32>
      %c0_13 = arith.constant 0 : index
      %c0_14 = arith.constant 0 : index
      %13 = vector.load %arg4[%c0_13, %c0_14] : memref<1x32xf32, #tpu.memory_space<vmem>>, vector<1x32xf32>
      %14 = vector.broadcast %13 : vector<1x32xf32> to vector<16x32xf32>
      %15 = arith.addf %12, %14 : vector<16x32xf32>
      %cst_15 = arith.constant 5.000000e-01 : f32
      %16 = vector.broadcast %cst_15 : f32 to vector<16x32xf32>
      %17 = arith.mulf %16, %15 : vector<16x32xf32>
      %cst_16 = arith.constant 0.707106769 : f32
      %18 = vector.broadcast %cst_16 : f32 to vector<16x32xf32>
      %19 = arith.mulf %15, %18 : vector<16x32xf32>
      %20 = math.erf %19 : vector<16x32xf32>
      %cst_17 = arith.constant 1.000000e+00 : f32
      %21 = vector.broadcast %cst_17 : f32 to vector<16x32xf32>
      %22 = arith.addf %21, %20 : vector<16x32xf32>
      %23 = arith.mulf %17, %22 : vector<16x32xf32>
      %cst_18 = arith.constant dense<0.000000e+00> : vector<16xf32>
      %24 = vector.multi_reduction <add>, %23, %cst_18 [1] : vector<16x32xf32> to vector<16xf32>
      %25 = vector.shape_cast %24 : vector<16xf32> to vector<16x1xf32>
      %cst_19 = arith.constant 3.200000e+01 : f32
      %26 = vector.broadcast %cst_19 : f32 to vector<16x1xf32>
      %27 = arith.divf %25, %26 : vector<16x1xf32>
      %28 = vector.broadcast %27 : vector<16x1xf32> to vector<16x32xf32>
      %29 = arith.subf %23, %28 : vector<16x32xf32>
      %30 = arith.mulf %29, %29 : vector<16x32xf32>
      %cst_20 = arith.constant dense<0.000000e+00> : vector<16xf32>
      %31 = vector.multi_reduction <add>, %30, %cst_20 [1] : vector<16x32xf32> to vector<16xf32>
      %32 = vector.shape_cast %31 : vector<16xf32> to vector<16x1xf32>
      %cst_21 = arith.constant 3.200000e+01 : f32
      %33 = vector.broadcast %cst_21 : f32 to vector<16x1xf32>
      %34 = arith.divf %32, %33 : vector<16x1xf32>
      %cst_22 = arith.constant 9.99999996E-13 : f32
      %35 = vector.broadcast %cst_22 : f32 to vector<16x1xf32>
      %36 = arith.addf %34, %35 : vector<16x1xf32>
      %37 = math.rsqrt %36 : vector<16x1xf32>
      %38 = vector.broadcast %37 : vector<16x1xf32> to vector<16x32xf32>
      %39 = arith.mulf %29, %38 : vector<16x32xf32>
      %c0_23 = arith.constant 0 : index
      %c0_24 = arith.constant 0 : index
      %40 = vector.load %arg8[%c0_23, %c0_24] : memref<16x32xf32, #tpu.memory_space<vmem>>, vector<16x32xf32>
      tpu.vector_store %arg8[%c0_23, %c0_24], %39 {strides = array<i32>} : memref<16x32xf32, #tpu.memory_space<vmem>>, vector<16x32xf32>,
    } else {
    }
    %c0 = arith.constant 0 : index
    %c0_1 = arith.constant 0 : index
    %3 = vector.load %arg8[%c0, %c0_1] : memref<16x32xf32, #tpu.memory_space<vmem>>, vector<16x32xf32>
    %c0_2 = arith.constant 0 : index
    %c0_3 = arith.constant 0 : index
    %4 = vector.load %arg5[%c0_2, %c0_3] : memref<32x128xf32, #tpu.memory_space<vmem>>, vector<32x128xf32>
    %cst = arith.constant dense<0.000000e+00> : vector<16x128xf32>
    %5 = tpu.matmul %3, %4, %cst {dimension_numbers = #tpu.dot_dimension_numbers<[1], [0], [0], [1], [0, 0, 1, 1], [], []>} : vector<16x32xf32>, vector<32x128xf32>, vector<16x128xf32> -> vector<16x128xf32>
    %c0_4 = arith.constant 0 : index
    %c0_5 = arith.constant 0 : index
    %6 = vector.load %arg6[%c0_4, %c0_5] : memref<1x128xf32, #tpu.memory_space<vmem>>, vector<1x128xf32>
    %7 = vector.broadcast %6 : vector<1x128xf32> to vector<16x128xf32>
    %8 = arith.addf %5, %7 : vector<16x128xf32>
    %c0_6 = arith.constant 0 : index
    %c0_7 = arith.constant 0 : index
    %9 = vector.load %arg7[%c0_6, %c0_7] : memref<16x128xf32, #tpu.memory_space<vmem>>, vector<16x128xf32>
    tpu.vector_store %arg7[%c0_6, %c0_7], %8 {strides = array<i32>} : memref<16x128xf32, #tpu.memory_space<vmem>>, vector<16x128xf32>,
    return
  }
  func.func @transform_0(%arg0: i32, %arg1: i32) -> (i32, i32) {
    %c0_i32 = arith.constant 0 : i32
    %c0_i32_0 = arith.constant 0 : i32
    return %arg0, %c0_i32 : i32, i32
  }
  func.func @transform_1(%arg0: i32, %arg1: i32) -> (i32, i32) {
    %c0_i32 = arith.constant 0 : i32
    %c0_i32_0 = arith.constant 0 : i32
    %c0_i32_1 = arith.constant 0 : i32
    return %c0_i32, %c0_i32_0 : i32, i32
  }
  func.func @transform_2(%arg0: i32, %arg1: i32) -> (i32, i32) {
    %c0_i32 = arith.constant 0 : i32
    %c0_i32_0 = arith.constant 0 : i32
    %c0_i32_1 = arith.constant 0 : i32
    return %c0_i32, %c0_i32_0 : i32, i32
  }
  func.func @transform_3(%arg0: i32, %arg1: i32) -> (i32, i32) {
    %c0_i32 = arith.constant 0 : i32
    %c0_i32_0 = arith.constant 0 : i32
    return %c0_i32, %arg1 : i32, i32
  }
  func.func @transform_4(%arg0: i32, %arg1: i32) -> (i32, i32) {
    %c0_i32 = arith.constant 0 : i32
    %c0_i32_0 = arith.constant 0 : i32
    return %c0_i32, %arg1 : i32, i32
  }
  func.func @transform_5(%arg0: i32, %arg1: i32) -> (i32, i32) {
    %c0_i32 = arith.constant 0 : i32
    return %arg0, %arg1 : i32, i32
  }
}

</mosaic_0001>

<llo_original>
// kernel: tpu_custom_call.1
$region0: #{tpu_custom_call.1}
  #allocation0 [shape = 'u32[]', space=smem, size = 0x4, offset = 0x4, fixed_abs, tag = 'smem constant byte address 0x4 - core index']
  #allocation1 [shape = 'u32[72,128]{1,0:T(1,128)}', space=vmem, size = 0x9000, scoped, tag = 'internal scratch']
  #allocation2 [shape = 'f32[16,32]{1,0:T(8,128)}', space=vmem, size = 0x2000, scoped, tag = 'scratch operand']
  %s0 = inlined_call_operand.hbm [shape: f32[16,32], index: 0, kind: input, shape index: {}]
  %s1 = inlined_call_operand.hbm [shape: f32[32,32], index: 1, kind: input, shape index: {}]
  %s2 = inlined_call_operand.vmem [shape: f32[1,32], index: 2, kind: input, shape index: {}]
  %s3 = inlined_call_operand.hbm [shape: f32[32,128], index: 3, kind: input, shape index: {}]
  %s4 = inlined_call_operand.vmem [shape: f32[1,128], index: 4, kind: input, shape index: {}]
  %s5 = inlined_call_operand.hbm [shape: f32[16,128], index: 5, kind: output, shape index: {}]
  %s6 = sld [smem:[#allocation0]]
  $region46: #{tpu_custom_call.1} parent=0
    _
  %s8 = ssub.s32 1, %s6
  %s9 = scalar_select 0, %s8, %s6
  $region1: #{tpu_custom_call.1} parent=0
    #allocation3 [shape = 'u8[8192]{0}', space=vmem, size = 0x2000, scoped, tag = 'input window, operand 0, single buffered']
    #allocation4 [shape = 's32[1]{0}', space=sflag, size = 0x4, scoped, tag = 'scoped memory for tpu_custom_call.1']
    #allocation5 [shape = 's32[1]{0}', space=sflag, size = 0x4, scoped, tag = 'scoped memory for tpu_custom_call.1']
    #allocation6 [shape = 'u8[16384]{0}', space=vmem, size = 0x4000, scoped, tag = 'input window, operand 1, single buffered']
    #allocation7 [shape = 's32[1]{0}', space=sflag, size = 0x4, scoped, tag = 'scoped memory for tpu_custom_call.1']
    #allocation8 [shape = 'u8[16384]{0}', space=vmem, size = 0x4000, scoped, tag = 'input window, operand 3, single buffered']
    #allocation9 [shape = 'u8[8192]{0}', space=vmem, size = 0x2000, scoped, tag = 'output window, operand 0, single buffered']
    %10 = vsyncpa [#allocation4], 0
    %11 = vsyncpa [#allocation7], 0
    %12 = vsyncpa [#allocation5], 0
    // Predicated region
    $region2: #{tpu_custom_call.1} parent=1 // pred_check
      _
    $region3: #{tpu_custom_call.1} parent=1 // pred_check_branch
      %14 = sbr.rel (0) target = $region5
    $region4: #{tpu_custom_call.1} parent=1 // pred_region
      %16 = vsyncadd [#allocation4], 0
      %s17 = sshll.u32 %s0, 4
      %s18 = int_to_ptr.hbm [resolvable:$true] %s17
      %s19 = sshll.u32 [#allocation3], 4
      %s20 = int_to_ptr.vmem [resolvable:$true] %s19
      %25 = dma.hbm_to_vmem [thread:$0]  %s18, 256, %s20, [#allocation4], 128, 128, 8
    $region5: #{tpu_custom_call.1} parent=1 // pred_fallthru
      _
    // Predicated region
    $region6: #{tpu_custom_call.1} parent=1 // pred_check
      _
    $region7: #{tpu_custom_call.1} parent=1 // pred_check_branch
      %27 = sbr.rel (0) target = $region9
    $region8: #{tpu_custom_call.1} parent=1 // pred_region
      %29 = vsyncadd [#allocation7], 0
      %s30 = sshll.u32 %s1, 4
      %s31 = int_to_ptr.hbm [resolvable:$true] %s30
      %s32 = sshll.u32 [#allocation6], 4
      %s33 = int_to_ptr.vmem [resolvable:$true] %s32
      %38 = dma.hbm_to_vmem [thread:$0]  %s31, 512, %s33, [#allocation7], 128, 128, 8
    $region9: #{tpu_custom_call.1} parent=1 // pred_fallthru
      _
    // Predicated region
    $region10: #{tpu_custom_call.1} parent=1 // pred_check
      _
    $region11: #{tpu_custom_call.1} parent=1 // pred_check_branch
      %40 = sbr.rel (0) target = $region13
    $region12: #{tpu_custom_call.1} parent=1 // pred_region
      _
    $region13: #{tpu_custom_call.1} parent=1 // pred_fallthru
      _
    // Predicated region
    $region14: #{tpu_custom_call.1} parent=1 // pred_check
      _
    $region15: #{tpu_custom_call.1} parent=1 // pred_check_branch
      %42 = sbr.rel (0) target = $region17
    $region16: #{tpu_custom_call.1} parent=1 // pred_region
      %44 = vsyncadd [#allocation7], 0
      %s45 = sshll.u32 %s3, 4
      %s46 = int_to_ptr.hbm [resolvable:$true] %s45
      %s47 = sshll.u32 [#allocation8], 4
      %s48 = int_to_ptr.vmem [resolvable:$true] %s47
      %53 = dma.hbm_to_vmem [thread:$0]  %s46, 512, %s48, [#allocation7], 128, 128, 8
    $region17: #{tpu_custom_call.1} parent=1 // pred_fallthru
      _
    // Predicated region
    $region18: #{tpu_custom_call.1} parent=1 // pred_check
      _
    $region19: #{tpu_custom_call.1} parent=1 // pred_check_branch
      %55 = sbr.rel (0) target = $region21
    $region20: #{tpu_custom_call.1} parent=1 // pred_region
      _
    $region21: #{tpu_custom_call.1} parent=1 // pred_fallthru
      _
    // Predicated region
    $region22: #{tpu_custom_call.1} parent=1 // pred_check
      _
    $region23: #{tpu_custom_call.1} parent=1 // pred_check_branch
      %57 = sbr.rel (0) target = $region25
    $region24: #{tpu_custom_call.1} parent=1 // pred_region
      %59 = dma.done [#allocation4], 256
    $region25: #{tpu_custom_call.1} parent=1 // pred_fallthru
      _
    // Predicated region
    $region26: #{tpu_custom_call.1} parent=1 // pred_check
      _
    $region27: #{tpu_custom_call.1} parent=1 // pred_check_branch
      %61 = sbr.rel (0) target = $region29
    $region28: #{tpu_custom_call.1} parent=1 // pred_region
      %63 = dma.done [#allocation7], 512
    $region29: #{tpu_custom_call.1} parent=1 // pred_fallthru
      _
    // Predicated region
    $region30: #{tpu_custom_call.1} parent=1 // pred_check
      _
    $region31: #{tpu_custom_call.1} parent=1 // pred_check_branch
      %65 = sbr.rel (0) target = $region33
    $region32: #{tpu_custom_call.1} parent=1 // pred_region
      %67 = dma.done [#allocation7], 512
    $region33: #{tpu_custom_call.1} parent=1 // pred_fallthru
      _
    %p68 = scmp.eq.s32.totalorder 0, 0
    // Predicated region
    $region34: #{tpu_custom_call.1} parent=1 // pred_check
      %p69 = pneg %p68
    $region35: #{tpu_custom_call.1} parent=1 // pred_check_branch
      %71 = sbr.rel (%p69) target = $region37
    $region36: #{tpu_custom_call.1} parent=1 // pred_region
      %v72 = vld [vmem:[#allocation3] sm:$0xff]
      %v73 = vld [vmem:[#allocation3 + $0x8] sm:$0xff]
      %v74 = vld [vmem:[#allocation6] sm:$0xff]
      %v75 = vld [vmem:[#allocation6 + $0x8] sm:$0xff]
      %v76 = vld [vmem:[#allocation6 + $0x10] sm:$0xff]
      %v77 = vld [vmem:[#allocation6 + $0x18] sm:$0xff]
      %v78 = vld [vmem:[%s2] sm:$0x1]
      %v80 = vperm.slane %v78, 0
      %vm82 = vcmask 261120
      %v84 = vsel %vm82, %v72, 0
      %v87 = vsel %vm82, %v73, 0
      %89 = vmatpush.msra.mxu0 0.0
      %90 = vmatpush.msra.mxu0 0.0
      %91 = vmatpush.msra.mxu0 0.0
      %92 = vmatpush.msra.mxu0 0.0
      %93 = vmatpush.msra.mxu0 0.0
      %94 = vmatpush.msra.mxu0 0.0
      %95 = vmatpush.msra.mxu0 0.0
      %96 = vmatpush.msra.mxu0 0.0
      %97 = vmatpush.msra.mxu0 0.0
      %98 = vmatpush.msra.mxu0 0.0
      %99 = vmatpush.msra.mxu0 0.0
      %100 = vmatpush.msra.mxu0 0.0
      %101 = vmatpush.msra.mxu0 %v77
      %102 = vmatpush.msra.mxu0 %v76
      %103 = vmatpush.msra.mxu0 %v75
      %104 = vmatpush.msra.mxu0 %v74
      %105 = vmatmul.f32.gmra.mxu0 %v84
      %v106 = vpop.f32.mrf.mxu0
      %v107 = vadd.f32 %v80, %v106
      %108 = vmatmul.f32.gmra.mxu0 %v87
      %v109 = vpop.f32.mrf.mxu0
      %v110 = vadd.f32 %v80, %v109
      %111 = vdwg.mxu0
      %v112 = vmul.f32 %v107, 0.5
      %v113 = vmul.f32 %v110, 0.5
      %v114 = vmul.f32 %v107, 0.70710677
      %v115 = vmul.f32 %v110, 0.70710677
      %v116 = vmul.f32 %v114, %v114
      %v117 = vmin.f32 16.0, %v116
      %v118 = vmul.f32 %v117, 2.1237322e-06
      %v119 = vadd.f32 %v118, 0.00028619796
      %v120 = vmul.f32 %v117, %v119
      %v121 = vadd.f32 %v120, 0.0036580483
      %v122 = vmul.f32 %v117, %v121
      %v123 = vadd.f32 %v122, 0.05243302
      %v124 = vmul.f32 %v117, %v123
      %v125 = vadd.f32 %v124, 0.18741608
      %v126 = vmul.f32 %v117, %v125
      %v127 = vadd.f32 %v126, 1.1283791
      %v128 = vmul.f32 %v114, %v127
      %v129 = vmul.f32 %v117, 3.8918573e-05
      %v130 = vadd.f32 %v129, 0.001143296
      %v131 = vmul.f32 %v117, %v130
      %v132 = vadd.f32 %v131, 0.014752088
      %v133 = vmul.f32 %v117, %v132
      %v134 = vadd.f32 %v133, 0.112945676
      %v135 = vmul.f32 %v117, %v134
      %v136 = vadd.f32 %v135, 0.4994258
      %v137 = vmul.f32 %v117, %v136
      %v138 = vadd.f32 %v137, 1.0
      %v139 = vrcp.pop %v138
      %v140 = vmul.f32 %v138, %v139
      %v141 = vsub.f32 1.0, %v140
      %v142 = vmul.f32 %v139, %v141
      %v143 = vadd.f32 %v139, %v142
      %vm144 = vweird.f32 %v138
      %vm145 = vweird.f32 %v139
      %vm146 = vmor %vm144, %vm145
      %v147 = vsel %vm146, %v139, %v143
      %v148 = vand.u32 2147483647, %v138
      %vm149 = vcmp.eq.f32.partialorder %v148, 8.507059e+37
      %v150 = vand.u32 %v138, 2147483648
      %v151 = vor.u32 1.1754944e-38, %v150
      %v152 = vsel %vm149, %v151, %v147
      %v153 = vmul.f32 %v128, %v152
      %v154 = vmin.f32 %v153, 1.0
      %v155 = vmax.f32 %v154, -1.0
      %v156 = vmul.f32 %v115, %v115
      %v157 = vmin.f32 16.0, %v156
      %v158 = vmul.f32 %v157, 2.1237322e-06
      %v159 = vadd.f32 %v158, 0.00028619796
      %v160 = vmul.f32 %v157, %v159
      %v161 = vadd.f32 %v160, 0.0036580483
      %v162 = vmul.f32 %v157, %v161
      %v163 = vadd.f32 %v162, 0.05243302
      %v164 = vmul.f32 %v157, %v163
      %v165 = vadd.f32 %v164, 0.18741608
      %v166 = vmul.f32 %v157, %v165
      %v167 = vadd.f32 %v166, 1.1283791
      %v168 = vmul.f32 %v115, %v167
      %v169 = vmul.f32 %v157, 3.8918573e-05
      %v170 = vadd.f32 %v169, 0.001143296
      %v171 = vmul.f32 %v157, %v170
      %v172 = vadd.f32 %v171, 0.014752088
      %v173 = vmul.f32 %v157, %v172
      %v174 = vadd.f32 %v173, 0.112945676
      %v175 = vmul.f32 %v157, %v174
      %v176 = vadd.f32 %v175, 0.4994258
      %v177 = vmul.f32 %v157, %v176
      %v178 = vadd.f32 %v177, 1.0
      %v179 = vrcp.pop %v178
      %v180 = vmul.f32 %v178, %v179
      %v181 = vsub.f32 1.0, %v180
      %v182 = vmul.f32 %v179, %v181
      %v183 = vadd.f32 %v179, %v182
      %vm184 = vweird.f32 %v178
      %vm185 = vweird.f32 %v179
      %vm186 = vmor %vm184, %vm185
      %v187 = vsel %vm186, %v179, %v183
      %v188 = vand.u32 2147483647, %v178
      %vm189 = vcmp.eq.f32.partialorder %v188, 8.507059e+37
      %v190 = vand.u32 %v178, 2147483648
      %v191 = vor.u32 1.1754944e-38, %v190
      %v192 = vsel %vm189, %v191, %v187
      %v193 = vmul.f32 %v168, %v192
      %v194 = vmin.f32 %v193, 1.0
      %v195 = vmax.f32 %v194, -1.0
      %v196 = vadd.f32 %v155, 1.0
      %v197 = vadd.f32 %v195, 1.0
      %v198 = vmul.f32 %v112, %v196
      %v199 = vmul.f32 %v113, %v197
      %v200 = vsel %vm82, %v198, 0.0
      %201 = vadd.xlane.f32.xlu0 %v200
      %v202 = vpop.xlane.xlu0 %201
      %v203 = vsel %vm82, %v199, 0.0
      %204 = vadd.xlane.f32.xlu0 %v203
      %v205 = vpop.xlane.xlu0 %204
      %v206 = vrcp.pop 32.0
      %v207 = vmul.f32 32.0, %v206
      %v208 = vsub.f32 1.0, %v207
      %v209 = vmul.f32 %v206, %v208
      %v210 = vadd.f32 %v206, %v209
      %vm211 = vweird.f32 %v206
      %v212 = vsel %vm211, %v206, %v210
      %v213 = vmul.f32 %v202, %v212
      %v214 = vmul.f32 %v205, %v212
      %v215 = vsub.f32 %v198, %v213
      %v216 = vsub.f32 %v199, %v214
      %v217 = vmul.f32 %v215, %v215
      %v218 = vmul.f32 %v216, %v216
      %v219 = vsel %vm82, %v217, 0.0
      %220 = vadd.xlane.f32.xlu0 %v219
      %v221 = vpop.xlane.xlu0 %220
      %v222 = vsel %vm82, %v218, 0.0
      %223 = vadd.xlane.f32.xlu0 %v222
      %v224 = vpop.xlane.xlu0 %223
      %v225 = vmul.f32 %v221, %v212
      %v226 = vmul.f32 %v224, %v212
      %v227 = vadd.f32 %v225, 1e-12
      %v228 = vadd.f32 %v226, 1e-12
      %v229 = vrsqrt.pop %v227
      %v230 = vmul.f32 %v229, %v227
      %v231 = vmul.f32 %v230, %v229
      %v232 = vmul.f32 0.5, %v231
      %v233 = vsub.f32 1.5, %v232
      %v234 = vmul.f32 %v229, %v233
      %vm235 = vweird.f32 %v227
      %vm236 = vweird.f32 %v229
      %vm237 = vmor %vm235, %vm236
      %v238 = vsel %vm237, %v229, %v234
      %v239 = vrsqrt.pop %v228
      %v240 = vmul.f32 %v239, %v228
      %v241 = vmul.f32 %v240, %v239
      %v242 = vmul.f32 0.5, %v241
      %v243 = vsub.f32 1.5, %v242
      %v244 = vmul.f32 %v239, %v243
      %vm245 = vweird.f32 %v228
      %vm246 = vweird.f32 %v239
      %vm247 = vmor %vm245, %vm246
      %v248 = vsel %vm247, %v239, %v244
      %v249 = vmul.f32 %v215, %v238
      %v250 = vmul.f32 %v216, %v248
      %251 = vst.msk [vmem:[#allocation2] sm:$0xff] %vm82, %v249
      %252 = vst.msk [vmem:[#allocation2 + $0x8] sm:$0xff] %vm82, %v250
    $region37: #{tpu_custom_call.1} parent=1 // pred_fallthru
      _
    %v253 = vld [vmem:[#allocation2] sm:$0xff]
    %v254 = vld [vmem:[#allocation2 + $0x8] sm:$0xff]
    %v255 = vld [vmem:[#allocation8] sm:$0xff]
    %v256 = vld [vmem:[#allocation8 + $0x8] sm:$0xff]
    %v257 = vld [vmem:[#allocation8 + $0x10] sm:$0xff]
    %v258 = vld [vmem:[#allocation8 + $0x18] sm:$0xff]
    %v259 = vld [vmem:[%s4] sm:$0x1]
    %v261 = vperm.slane %v259, 0
    %vm263 = vcmask 261120
    %v265 = vsel %vm263, %v253, 0
    %v268 = vsel %vm263, %v254, 0
    %270 = vmatpush.msra.mxu0 0.0
    %271 = vmatpush.msra.mxu0 0.0
    %272 = vmatpush.msra.mxu0 0.0
    %273 = vmatpush.msra.mxu0 0.0
    %274 = vmatpush.msra.mxu0 0.0
    %275 = vmatpush.msra.mxu0 0.0
    %276 = vmatpush.msra.mxu0 0.0
    %277 = vmatpush.msra.mxu0 0.0
    %278 = vmatpush.msra.mxu0 0.0
    %279 = vmatpush.msra.mxu0 0.0
    %280 = vmatpush.msra.mxu0 0.0
    %281 = vmatpush.msra.mxu0 0.0
    %282 = vmatpush.msra.mxu0 %v258
    %283 = vmatpush.msra.mxu0 %v257
    %284 = vmatpush.msra.mxu0 %v256
    %285 = vmatpush.msra.mxu0 %v255
    %286 = vmatmul.f32.gmra.mxu0 %v265
    %v287 = vpop.f32.mrf.mxu0
    %v288 = vadd.f32 %v261, %v287
    %289 = vmatmul.f32.gmra.mxu0 %v268
    %v290 = vpop.f32.mrf.mxu0
    %v291 = vadd.f32 %v261, %v290
    %292 = vdwg.mxu0
    %293 = vst [vmem:[#allocation9] sm:$0xff] %v288
    %294 = vst [vmem:[#allocation9 + $0x8] sm:$0xff] %v291
    // Predicated region
    $region38: #{tpu_custom_call.1} parent=1 // pred_check
      _
    $region39: #{tpu_custom_call.1} parent=1 // pred_check_branch
      %296 = sbr.rel (0) target = $region41
    $region40: #{tpu_custom_call.1} parent=1 // pred_region
      %298 = vsyncadd [#allocation5], 0
      %s299 = sshll.u32 [#allocation9], 4
      %s300 = int_to_ptr.vmem [resolvable:$true] %s299
      %s301 = sshll.u32 %s5, 4
      %s302 = int_to_ptr.hbm [resolvable:$true] %s301
      %307 = dma.vmem_to_hbm [thread:$0]  %s300, 256, %s302, [#allocation5], 128, 128, 8
    $region41: #{tpu_custom_call.1} parent=1 // pred_fallthru
      _
    // Predicated region
    $region42: #{tpu_custom_call.1} parent=1 // pred_check
      _
    $region43: #{tpu_custom_call.1} parent=1 // pred_check_branch
      %309 = sbr.rel (0) target = $region45
    $region44: #{tpu_custom_call.1} parent=1 // pred_region
      %311 = dma.done [#allocation5], 256
    $region45: #{tpu_custom_call.1} parent=1 // pred_fallthru
      _
    %312 = vsyncpa [#allocation4], 1
    %313 = vsyncpa [#allocation7], 1
    %314 = vsyncpa [#allocation5], 1

</llo_original>
